<compile_context>
chip_gen: v5e
topology: v5e:2x2
jax: 0.10.0
libtpu: 0.0.40
codegen_flags: <defaults>
</compile_context>

<pallas_src>
import functools

import jax
import jax.numpy as jnp
from jax import lax
from jax.experimental import pallas as pl
from jax.experimental.pallas import tpu as pltpu


def _round_up(x, m):
    return (x + m - 1) // m * m


def prepare_oim_lut(lut, *, block_c=512, matmul_dtype=jnp.bfloat16):
    """Pad the class axis to a multiple of 128, cast, and pre-transpose into
    class blocks of shape (n_ct, F, tc).  The LUT is a persistent OIM buffer,
    so do this once per LUT update and reuse the result across calls."""
    c, f = lut.shape
    cp = _round_up(max(c, 128), 128)
    tc = min(block_c, cp)
    while cp % tc != 0:            # tc stays a multiple of 128 and divides cp
        tc -= 128
    lut_p = jnp.pad(lut.astype(matmul_dtype), ((0, cp - c), (0, 0)))   # (cp, F)
    return lut_p.reshape(cp // tc, tc, f).transpose(0, 2, 1)           # (n_ct, F, tc)


def _oim_loss_kernel(x_ref, lut_ref, tgt_ref, logits_ref, ploss_ref,
                     m_sc, l_sc, corr_sc, *, scalar, n_real, c_real, tn, tc,
                     n_padded, c_padded, lut_resident, matmul_dtype):
    i = pl.program_id(0)          # batch tile axis (parallel)
    j = pl.program_id(1)          # class tile axis (reduction, arbitrary)

    # --- init per-row online-LSE state at the first class tile --------------
    @pl.when(j == 0)
    def _init():
        m_sc[...] = jnp.full(m_sc.shape, -jnp.inf, dtype=m_sc.dtype)
        l_sc[...] = jnp.zeros_like(l_sc)
        corr_sc[...] = jnp.zeros_like(corr_sc)

    # --- logits tile: bf16 MXU matmul with f32 accumulation -----------------
    x = x_ref[...].astype(matmul_dtype)                      # (tn, F)
    # LUT block is pre-transposed to (F, tc) -> no per-step RHS transpose.
    w = lut_ref[j] if lut_resident else lut_ref[...]         # (F, tc)
    s = jnp.dot(x, w, preferred_element_type=jnp.float32)    # (tn, tc) f32
    if scalar != 1.0:
        s = s * jnp.float32(scalar)                          # fold `scalar` here
    logits_ref[...] = s.astype(logits_ref.dtype)

    # --- online logsumexp over the (tiled) class axis ------------------------
    col = lax.broadcasted_iota(jnp.int32, (tn, tc), 1)       # tile-local class idx

    # Padded classes -> -inf.  Only emitted when the class axis is actually
    # padded.  NaN-safety: padding is < 128 <= tc, so every tile (including
    # j == 0) contains at least one real class and `m` never stays at -inf.
    if c_padded:
        s_m = jnp.where(col < (c_real - j * tc), s, -jnp.inf)
    else:
        s_m = s

    m_prev = m_sc[...]
    m_new = jnp.maximum(m_prev, jnp.max(s_m, axis=-1, keepdims=True))
    l_sc[...] = (l_sc[...] * jnp.exp(m_prev - m_new)
                 + jnp.sum(jnp.exp(s_m - m_new), axis=-1, keepdims=True))
    m_sc[...] = m_new

    # Target logit (kept in f32): single compare + select + lane reduce,
    # compared against the tile-local target index (no global col add).
    corr_sc[...] += jnp.sum(jnp.where(col == (tgt_ref[...] - j * tc), s, 0.0),
                            axis=-1, keepdims=True)

    # --- finalize per-sample loss at the last class tile ----------------------
    @pl.when(j == pl.num_programs(1) - 1)
    def _finalize():
        per = m_sc[...] + jnp.log(l_sc[...]) - corr_sc[...]      # (tn, 1)
        if n_padded:
            row = i * tn + lax.broadcasted_iota(jnp.int32, (tn, 1), 0)
            per = jnp.where(row < n_real, per, 0.0)              # mask pad rows
        ploss_ref[...] = per


def oim_loss(inputs, targets, lut, scalar=1.0, *,
             block_n=256, block_c=512, matmul_dtype=jnp.bfloat16,
             logits_dtype=None, lut_prepared=None):
    """Pallas implementation of OIMLoss.forward. Returns (loss, scaled_logits).

    `lut_prepared` (from prepare_oim_lut with the same block_c / matmul_dtype)
    lets callers cache the padded/cast/transposed LUT across invocations.
    """
    n, f = inputs.shape
    c, f2 = lut.shape
    assert f == f2

    if lut_prepared is None:
        lut_prepared = prepare_oim_lut(lut, block_c=block_c,
                                       matmul_dtype=matmul_dtype)
    n_ct, f3, tc = lut_prepared.shape
    assert f3 == f
    cp = n_ct * tc

    # Batch tiling: tn multiple of 16 (bf16 sublane packing).  Prefer >= 2
    # batch tiles when the batch allows it so the "parallel" grid axis shards
    # across both v7x TensorCores (no effect on single-TC v5e/v6e).
    ntiles = max(1, -(-n // block_n))
    if n > 16:
        ntiles = max(ntiles, 2)
    tn = max(16, _round_up(-(-n // ntiles), 16))
    np_ = tn * ntiles

    logits_dtype = inputs.dtype if logits_dtype is None else logits_dtype

    # Inputs stay in their original dtype (cast to bf16 inside the kernel);
    # only a row pad is done host-side when the batch is not tile-aligned.
    x_p = inputs if np_ == n else jnp.pad(inputs, ((0, np_ - n), (0, 0)))
    tgt_p = targets.astype(jnp.int32)
    if np_ != n:
        tgt_p = jnp.pad(tgt_p, (0, np_ - n))
    tgt_p = tgt_p.reshape(np_, 1)

    # Keep the whole LUT resident in VMEM when it comfortably fits: constant
    # index_map => DMA'd from HBM once for the whole grid.  8 MiB threshold
    # leaves headroom (double-buffered x / logits tiles + temporaries) under
    # the 32 MiB scoped-VMEM default on v5e/v6e and on v7x (64 MiB physical).
    lut_bytes = lut_prepared.size * lut_prepared.dtype.itemsize
    lut_resident = lut_bytes <= 8 * 1024 * 1024

    if lut_resident:
        lut_spec = pl.BlockSpec((n_ct, f, tc), lambda i, j: (0, 0, 0))
    else:
        # Stream one (F, tc) class block per step (re-read once per batch tile).
        lut_spec = pl.BlockSpec((pl.Squeezed(), f, tc), lambda i, j: (j, 0, 0))

    grid = (np_ // tn, cp // tc)

    kernel = functools.partial(
        _oim_loss_kernel, scalar=float(scalar), n_real=n, c_real=c,
        tn=tn, tc=tc, n_padded=(np_ > n), c_padded=(cp > c),
        lut_resident=lut_resident, matmul_dtype=matmul_dtype)

    logits_pad, per_sample = pl.pallas_call(
        kernel,
        grid=grid,
        in_specs=[
            pl.BlockSpec((tn, f), lambda i, j: (i, 0)),    # inputs (reused over j)
            lut_spec,                                      # LUT (resident or streamed)
            pl.BlockSpec((tn, 1), lambda i, j: (i, 0)),    # targets
        ],
        out_specs=(
            pl.BlockSpec((tn, tc), lambda i, j: (i, j)),   # lane-dense logits
            pl.BlockSpec((tn, 1), lambda i, j: (i, 0)),    # per-sample CE partials
        ),
        out_shape=(
            jax.ShapeDtypeStruct((np_, cp), logits_dtype),
            jax.ShapeDtypeStruct((np_, 1), jnp.float32),
        ),
        scratch_shapes=[
            pltpu.VMEM((tn, 1), jnp.float32),   # running max
            pltpu.VMEM((tn, 1), jnp.float32),   # running sum of exp
            pltpu.VMEM((tn, 1), jnp.float32),   # target logit
        ],
        compiler_params=pltpu.CompilerParams(
            dimension_semantics=("parallel", "arbitrary"),
        ),
    )(x_p, lut_prepared, tgt_p)

    loss = jnp.sum(per_sample) / jnp.float32(n)   # mean over true batch size
    if np_ != n or cp != c:
        logits_pad = logits_pad[:n, :c]
    return loss, logits_pad


if __name__ == "__main__":
    # Small deterministic setup consistent with OIMLoss.__init__:
    #   num_features=32, num_classes=16, batch N=8
    num_features = 32
    num_classes = 16
    batch = 8
    scalar = 2.0

    key = jax.random.PRNGKey(0)
    k_in, k_lut, k_tgt = jax.random.split(key, 3)

    inputs = jax.random.normal(k_in, (batch, num_features), dtype=jnp.float32)
    # LUT rows are unit-normalized feature prototypes (as OIM maintains them).
    lut = jax.random.normal(k_lut, (num_classes, num_features), dtype=jnp.float32)
    lut = lut / jnp.linalg.norm(lut, axis=1, keepdims=True)
    targets = jax.random.randint(k_tgt, (batch,), 0, num_classes, dtype=jnp.int32)

    # The LUT is a persistent OIM buffer: pad/cast/transpose it once and reuse.
    lut_prepared = prepare_oim_lut(lut)

    loss, logits = oim_loss(inputs, targets, lut, scalar=scalar,
                            lut_prepared=lut_prepared)
    jax.block_until_ready((loss, logits))
    assert logits.shape == (batch, num_classes)

    # Reference 1: same numerics as the kernel (bf16 MXU matmul, f32 scale/softmax).
    ref_logits = scalar * jnp.dot(inputs.astype(jnp.bfloat16),
                                  lut.astype(jnp.bfloat16).T,
                                  preferred_element_type=jnp.float32)
    ref_lse = jax.scipy.special.logsumexp(ref_logits, axis=-1)
    ref_loss = jnp.mean(ref_lse - ref_logits[jnp.arange(batch), targets])
    assert jnp.allclose(logits.astype(jnp.float32), ref_logits, atol=1e-2, rtol=1e-2)
    assert jnp.allclose(loss, ref_loss, atol=1e-2, rtol=1e-2)

    # Reference 2: full-precision module semantics (loose tol for bf16 matmul).
    fp_logits = scalar * (inputs @ lut.T)
    fp_lse = jax.scipy.special.logsumexp(fp_logits, axis=-1)
    fp_loss = jnp.mean(fp_lse - fp_logits[jnp.arange(batch), targets])
    assert jnp.allclose(logits.astype(jnp.float32), fp_logits, atol=5e-2, rtol=5e-2)
    assert jnp.allclose(loss, fp_loss, atol=5e-2, rtol=5e-2)

    print("KERNEL_OK")
</pallas_src>

<mosaic_0001>
module attributes {stable_mosaic.version = 11 : i64} {
  func.func @_oim_loss_kernel(%arg0: i32, %arg1: i32, %arg2: memref<16x32xf32, #tpu.memory_space<vmem>>, %arg3: memref<1x32x128xbf16, #tpu.memory_space<vmem>>, %arg4: memref<16x1xi32, #tpu.memory_space<vmem>>, %arg5: memref<16x128xf32, #tpu.memory_space<vmem>>, %arg6: memref<16x1xf32, #tpu.memory_space<vmem>>, %arg7: memref<16x1xf32, #tpu.memory_space<vmem>>, %arg8: memref<16x1xf32, #tpu.memory_space<vmem>>, %arg9: memref<16x1xf32, #tpu.memory_space<vmem>>) attributes {dimension_semantics = [#tpu.dimension_semantics<parallel>, #tpu.dimension_semantics<arbitrary>], iteration_bounds = array<i64: 1, 1>, scalar_prefetch = 0 : i64, scratch_operands = 3 : i64, tpu.core_type = #tpu.core_type<tc>, window_params = [{transform_indices = @transform_0, window_bounds = array<i64: 16, 32>}, {pipeline_mode = #tpu.pipeline_mode<synchronous>, transform_indices = @transform_1, window_bounds = array<i64: 1, 32, 128>}, {transform_indices = @transform_2, window_bounds = array<i64: 16, 1>}, {transform_indices = @transform_3, window_bounds = array<i64: 16, 128>}, {transform_indices = @transform_4, window_bounds = array<i64: 16, 1>}]} {
    %c0_i32 = arith.constant 0 : i32
    %0 = arith.cmpi eq, %arg1, %c0_i32 : i32
    %1 = arith.extui %0 : i1 to i32
    %c0_i32_0 = arith.constant 0 : i32
    %2 = arith.cmpi ne, %1, %c0_i32_0 : i32
    scf.if %2 {
      %cst_29 = arith.constant 0xFF800000 : f32
      %51 = vector.broadcast %cst_29 : f32 to vector<16x1xf32>
      %c0_30 = arith.constant 0 : index
      %c0_31 = arith.constant 0 : index
      %52 = vector.load %arg7[%c0_30, %c0_31] : memref<16x1xf32, #tpu.memory_space<vmem>>, vector<16x1xf32>
      tpu.vector_store %arg7[%c0_30, %c0_31], %51 {strides = array<i32>} : memref<16x1xf32, #tpu.memory_space<vmem>>, vector<16x1xf32>,
      %cst_32 = arith.constant 0.000000e+00 : f32
      %53 = vector.broadcast %cst_32 : f32 to vector<16x1xf32>
      %c0_33 = arith.constant 0 : index
      %c0_34 = arith.constant 0 : index
      %54 = vector.load %arg8[%c0_33, %c0_34] : memref<16x1xf32, #tpu.memory_space<vmem>>, vector<16x1xf32>
      tpu.vector_store %arg8[%c0_33, %c0_34], %53 {strides = array<i32>} : memref<16x1xf32, #tpu.memory_space<vmem>>, vector<16x1xf32>,
      %cst_35 = arith.constant 0.000000e+00 : f32
      %55 = vector.broadcast %cst_35 : f32 to vector<16x1xf32>
      %c0_36 = arith.constant 0 : index
      %c0_37 = arith.constant 0 : index
      %56 = vector.load %arg9[%c0_36, %c0_37] : memref<16x1xf32, #tpu.memory_space<vmem>>, vector<16x1xf32>
      tpu.vector_store %arg9[%c0_36, %c0_37], %55 {strides = array<i32>} : memref<16x1xf32, #tpu.memory_space<vmem>>, vector<16x1xf32>,
    } else {
    }
    %c0 = arith.constant 0 : index
    %c0_1 = arith.constant 0 : index
    %3 = vector.load %arg2[%c0, %c0_1] : memref<16x32xf32, #tpu.memory_space<vmem>>, vector<16x32xf32>
    %4 = arith.truncf %3 : vector<16x32xf32> to vector<16x32xbf16>
    %5 = arith.index_cast %arg1 : i32 to index
    %c0_2 = arith.constant 0 : index
    %c0_3 = arith.constant 0 : index
    %6 = vector.load %arg3[%5, %c0_2, %c0_3] : memref<1x32x128xbf16, #tpu.memory_space<vmem>>, vector<1x32x128xbf16>
    %7 = vector.shape_cast %6 : vector<1x32x128xbf16> to vector<32x128xbf16>
    %cst = arith.constant dense<0.000000e+00> : vector<16x128xf32>
    %8 = tpu.matmul %4, %7, %cst {dimension_numbers = #tpu.dot_dimension_numbers<[1], [0], [0], [1], [0, 0, 1, 1], [], []>} : vector<16x32xbf16>, vector<32x128xbf16>, vector<16x128xf32> -> vector<16x128xf32>
    %cst_4 = arith.constant 2.000000e+00 : f32
    %9 = vector.broadcast %cst_4 : f32 to vector<16x128xf32>
    %10 = arith.mulf %8, %9 : vector<16x128xf32>
    %c0_5 = arith.constant 0 : index
    %c0_6 = arith.constant 0 : index
    %11 = vector.load %arg5[%c0_5, %c0_6] : memref<16x128xf32, #tpu.memory_space<vmem>>, vector<16x128xf32>
    tpu.vector_store %arg5[%c0_5, %c0_6], %10 {strides = array<i32>} : memref<16x128xf32, #tpu.memory_space<vmem>>, vector<16x128xf32>,
    %12 = tpu.iota {dimensions = array<i32: 1>} : vector<16x128xi32>
    %c128_i32 = arith.constant 128 : i32
    %13 = arith.muli %arg1, %c128_i32 : i32
    %c16_i32 = arith.constant 16 : i32
    %14 = arith.subi %c16_i32, %13 : i32
    %15 = vector.broadcast %14 : i32 to vector<16x128xi32>
    %16 = arith.cmpi slt, %12, %15 : vector<16x128xi32>
    %cst_7 = arith.constant 0xFF800000 : f32
    %17 = vector.broadcast %cst_7 : f32 to vector<16x128xf32>
    %18 = arith.select %16, %10, %17 : vector<16x128xi1>, vector<16x128xf32>
    %c0_8 = arith.constant 0 : index
    %c0_9 = arith.constant 0 : index
    %19 = vector.load %arg7[%c0_8, %c0_9] : memref<16x1xf32, #tpu.memory_space<vmem>>, vector<16x1xf32>
    %cst_10 = arith.constant dense<0xFF800000> : vector<16xf32>
    %20 = vector.multi_reduction <maximumf>, %18, %cst_10 [1] : vector<16x128xf32> to vector<16xf32>
    %21 = vector.shape_cast %20 : vector<16xf32> to vector<16x1xf32>
    %22 = arith.maximumf %19, %21 : vector<16x1xf32>
    %c0_11 = arith.constant 0 : index
    %c0_12 = arith.constant 0 : index
    %23 = vector.load %arg8[%c0_11, %c0_12] : memref<16x1xf32, #tpu.memory_space<vmem>>, vector<16x1xf32>
    %24 = arith.subf %19, %22 : vector<16x1xf32>
    %25 = math.exp %24 : vector<16x1xf32>
    %26 = arith.mulf %23, %25 : vector<16x1xf32>
    %27 = vector.broadcast %22 : vector<16x1xf32> to vector<16x128xf32>
    %28 = arith.subf %18, %27 : vector<16x128xf32>
    %29 = math.exp %28 : vector<16x128xf32>
    %cst_13 = arith.constant dense<0.000000e+00> : vector<16xf32>
    %30 = vector.multi_reduction <add>, %29, %cst_13 [1] : vector<16x128xf32> to vector<16xf32>
    %31 = vector.shape_cast %30 : vector<16xf32> to vector<16x1xf32>
    %32 = arith.addf %26, %31 : vector<16x1xf32>
    %c0_14 = arith.constant 0 : index
    %c0_15 = arith.constant 0 : index
    %33 = vector.load %arg8[%c0_14, %c0_15] : memref<16x1xf32, #tpu.memory_space<vmem>>, vector<16x1xf32>
    tpu.vector_store %arg8[%c0_14, %c0_15], %32 {strides = array<i32>} : memref<16x1xf32, #tpu.memory_space<vmem>>, vector<16x1xf32>,
    %c0_16 = arith.constant 0 : index
    %c0_17 = arith.constant 0 : index
    %34 = vector.load %arg7[%c0_16, %c0_17] : memref<16x1xf32, #tpu.memory_space<vmem>>, vector<16x1xf32>
    tpu.vector_store %arg7[%c0_16, %c0_17], %22 {strides = array<i32>} : memref<16x1xf32, #tpu.memory_space<vmem>>, vector<16x1xf32>,
    %c0_18 = arith.constant 0 : index
    %c0_19 = arith.constant 0 : index
    %35 = vector.load %arg9[%c0_18, %c0_19] : memref<16x1xf32, #tpu.memory_space<vmem>>, vector<16x1xf32>
    %c0_20 = arith.constant 0 : index
    %c0_21 = arith.constant 0 : index
    %36 = vector.load %arg4[%c0_20, %c0_21] : memref<16x1xi32, #tpu.memory_space<vmem>>, vector<16x1xi32>
    %c128_i32_22 = arith.constant 128 : i32
    %37 = arith.muli %arg1, %c128_i32_22 : i32
    %38 = vector.broadcast %37 : i32 to vector<16x1xi32>
    %39 = arith.subi %36, %38 : vector<16x1xi32>
    %40 = vector.broadcast %39 : vector<16x1xi32> to vector<16x128xi32>
    %41 = arith.cmpi eq, %12, %40 : vector<16x128xi32>
    %cst_23 = arith.constant 0.000000e+00 : f32
    %42 = vector.broadcast %cst_23 : f32 to vector<16x128xf32>
    %43 = arith.select %41, %10, %42 : vector<16x128xi1>, vector<16x128xf32>
    %cst_24 = arith.constant dense<0.000000e+00> : vector<16xf32>
    %44 = vector.multi_reduction <add>, %43, %cst_24 [1] : vector<16x128xf32> to vector<16xf32>
    %45 = vector.shape_cast %44 : vector<16xf32> to vector<16x1xf32>
    %46 = arith.addf %35, %45 : vector<16x1xf32>
    %c0_25 = arith.constant 0 : index
    %c0_26 = arith.constant 0 : index
    %47 = vector.load %arg9[%c0_25, %c0_26] : memref<16x1xf32, #tpu.memory_space<vmem>>, vector<16x1xf32>
    tpu.vector_store %arg9[%c0_25, %c0_26], %46 {strides = array<i32>} : memref<16x1xf32, #tpu.memory_space<vmem>>, vector<16x1xf32>,
    %c0_i32_27 = arith.constant 0 : i32
    %48 = arith.cmpi eq, %arg1, %c0_i32_27 : i32
    %49 = arith.extui %48 : i1 to i32
    %c0_i32_28 = arith.constant 0 : i32
    %50 = arith.cmpi ne, %49, %c0_i32_28 : i32
    scf.if %50 {
      %c0_29 = arith.constant 0 : index
      %c0_30 = arith.constant 0 : index
      %51 = vector.load %arg7[%c0_29, %c0_30] : memref<16x1xf32, #tpu.memory_space<vmem>>, vector<16x1xf32>
      %c0_31 = arith.constant 0 : index
      %c0_32 = arith.constant 0 : index
      %52 = vector.load %arg8[%c0_31, %c0_32] : memref<16x1xf32, #tpu.memory_space<vmem>>, vector<16x1xf32>
      %53 = math.log %52 : vector<16x1xf32>
      %54 = arith.addf %51, %53 : vector<16x1xf32>
      %c0_33 = arith.constant 0 : index
      %c0_34 = arith.constant 0 : index
      %55 = vector.load %arg9[%c0_33, %c0_34] : memref<16x1xf32, #tpu.memory_space<vmem>>, vector<16x1xf32>
      %56 = arith.subf %54, %55 : vector<16x1xf32>
      %c16_i32_35 = arith.constant 16 : i32
      %57 = arith.muli %arg0, %c16_i32_35 : i32
      %58 = tpu.iota {dimensions = array<i32: 0>} : vector<16x1xi32>
      %59 = vector.broadcast %57 : i32 to vector<16x1xi32>
      %60 = arith.addi %59, %58 : vector<16x1xi32>
      %c8_i32 = arith.constant 8 : i32
      %61 = vector.broadcast %c8_i32 : i32 to vector<16x1xi32>
      %62 = arith.cmpi slt, %60, %61 : vector<16x1xi32>
      %cst_36 = arith.constant 0.000000e+00 : f32
      %63 = vector.broadcast %cst_36 : f32 to vector<16x1xf32>
      %64 = arith.select %62, %56, %63 : vector<16x1xi1>, vector<16x1xf32>
      %c0_37 = arith.constant 0 : index
      %c0_38 = arith.constant 0 : index
      %65 = vector.load %arg6[%c0_37, %c0_38] : memref<16x1xf32, #tpu.memory_space<vmem>>, vector<16x1xf32>
      tpu.vector_store %arg6[%c0_37, %c0_38], %64 {strides = array<i32>} : memref<16x1xf32, #tpu.memory_space<vmem>>, vector<16x1xf32>,
    } else {
    }
    return
  }
  func.func @transform_0(%arg0: i32, %arg1: i32) -> (i32, i32) {
    %c0_i32 = arith.constant 0 : i32
    %c0_i32_0 = arith.constant 0 : i32
    return %arg0, %c0_i32 : i32, i32
  }
  func.func @transform_1(%arg0: i32, %arg1: i32) -> (i32, i32, i32) {
    %c0_i32 = arith.constant 0 : i32
    %c0_i32_0 = arith.constant 0 : i32
    %c0_i32_1 = arith.constant 0 : i32
    %c0_i32_2 = arith.constant 0 : i32
    return %c0_i32, %c0_i32_0, %c0_i32_1 : i32, i32, i32
  }
  func.func @transform_2(%arg0: i32, %arg1: i32) -> (i32, i32) {
    %c0_i32 = arith.constant 0 : i32
    %c0_i32_0 = arith.constant 0 : i32
    return %arg0, %c0_i32 : i32, i32
  }
  func.func @transform_3(%arg0: i32, %arg1: i32) -> (i32, i32) {
    %c0_i32 = arith.constant 0 : i32
    return %arg0, %arg1 : i32, i32
  }
  func.func @transform_4(%arg0: i32, %arg1: i32) -> (i32, i32) {
    %c0_i32 = arith.constant 0 : i32
    %c0_i32_0 = arith.constant 0 : i32
    return %arg0, %c0_i32 : i32, i32
  }
}

</mosaic_0001>

<llo_original>
// kernel: tpu_custom_call.1
$region0: #{tpu_custom_call.1}
  #allocation0 [shape = 'u32[]', space=smem, size = 0x4, offset = 0x4, fixed_abs, tag = 'smem constant byte address 0x4 - core index']
  #allocation1 [shape = 'u32[72,128]{1,0:T(1,128)}', space=vmem, size = 0x9000, scoped, tag = 'internal scratch']
  #allocation2 [shape = 'f32[16,1]{1,0:T(8,128)}', space=vmem, size = 0x2000, scoped, tag = 'scratch operand']
  #allocation3 [shape = 'f32[16,1]{1,0:T(8,128)}', space=vmem, size = 0x2000, scoped, tag = 'scratch operand']
  #allocation4 [shape = 'f32[16,1]{1,0:T(8,128)}', space=vmem, size = 0x2000, scoped, tag = 'scratch operand']
  %s0 = inlined_call_operand.vmem [shape: f32[16,32], index: 0, kind: input, shape index: {}]
  %s1 = inlined_call_operand.hbm [shape: bf16[1,32,128], index: 1, kind: input, shape index: {}]
  %s2 = inlined_call_operand.vmem [shape: s32[16,1], index: 2, kind: input, shape index: {}]
  %s3 = inlined_call_operand.hbm [shape: f32[16,128], index: 3, kind: output, shape index: {0}]
  %s4 = inlined_call_operand.vmem [shape: f32[16,1], index: 4, kind: output, shape index: {1}]
  %5 = xla_tuple %s3, %s4
  %s6 = sld [smem:[#allocation0]]
  $region42: #{tpu_custom_call.1} parent=0
    _
  %s8 = ssub.s32 1, %s6
  %s9 = scalar_select 0, %s8, %s6
  $region1: #{tpu_custom_call.1} parent=0
    #allocation5 [shape = 'u8[8192]{0}', space=vmem, size = 0x2000, scoped, tag = 'input window, operand 1, single buffered']
    #allocation6 [shape = 's32[1]{0}', space=sflag, size = 0x4, scoped, tag = 'scoped memory for tpu_custom_call.1']
    #allocation7 [shape = 's32[1]{0}', space=sflag, size = 0x4, scoped, tag = 'scoped memory for tpu_custom_call.1']
    #allocation8 [shape = 'u8[8192]{0}', space=vmem, size = 0x2000, scoped, tag = 'output window, operand 0, single buffered']
    %10 = vsyncpa [#allocation6], 0
    %11 = vsyncpa [#allocation7], 0
    // Predicated region
    $region2: #{tpu_custom_call.1} parent=1 // pred_check
      _
    $region3: #{tpu_custom_call.1} parent=1 // pred_check_branch
      %13 = sbr.rel (0) target = $region5
    $region4: #{tpu_custom_call.1} parent=1 // pred_region
      _
    $region5: #{tpu_custom_call.1} parent=1 // pred_fallthru
      _
    // Predicated region
    $region6: #{tpu_custom_call.1} parent=1 // pred_check
      _
    $region7: #{tpu_custom_call.1} parent=1 // pred_check_branch
      %15 = sbr.rel (0) target = $region9
    $region8: #{tpu_custom_call.1} parent=1 // pred_region
      %17 = vsyncadd [#allocation6], 0
      %s18 = sshll.u32 %s1, 4
      %s19 = int_to_ptr.hbm [resolvable:$true] %s18
      %s20 = sshll.u32 [#allocation5], 4
      %s21 = int_to_ptr.vmem [resolvable:$true] %s20
      %26 = dma.hbm_to_vmem [thread:$0]  %s19, 256, %s21, [#allocation6], 64, 64, 4
    $region9: #{tpu_custom_call.1} parent=1 // pred_fallthru
      _
    // Predicated region
    $region10: #{tpu_custom_call.1} parent=1 // pred_check
      _
    $region11: #{tpu_custom_call.1} parent=1 // pred_check_branch
      %28 = sbr.rel (0) target = $region13
    $region12: #{tpu_custom_call.1} parent=1 // pred_region
      _
    $region13: #{tpu_custom_call.1} parent=1 // pred_fallthru
      _
    // Predicated region
    $region14: #{tpu_custom_call.1} parent=1 // pred_check
      _
    $region15: #{tpu_custom_call.1} parent=1 // pred_check_branch
      %30 = sbr.rel (0) target = $region17
    $region16: #{tpu_custom_call.1} parent=1 // pred_region
      %32 = dma.done [#allocation6], 256
    $region17: #{tpu_custom_call.1} parent=1 // pred_fallthru
      _
    %p34 = scmp.eq.s32.totalorder 0, 0
    // Predicated region
    $region18: #{tpu_custom_call.1} parent=1 // pred_check
      %p35 = pneg %p34
    $region19: #{tpu_custom_call.1} parent=1 // pred_check_branch
      %37 = sbr.rel (%p35) target = $region21
    $region20: #{tpu_custom_call.1} parent=1 // pred_region
      %vm38 = vcmask 7168
      %39 = vst.msk [vmem:[#allocation2] sm:$0xff] %vm38, -inf
      %40 = vst.msk [vmem:[#allocation2 + $0x8] sm:$0xff] %vm38, -inf
      %41 = vst.msk [vmem:[#allocation3] sm:$0xff] %vm38, 0.0
      %42 = vst.msk [vmem:[#allocation3 + $0x8] sm:$0xff] %vm38, 0.0
      %43 = vst.msk [vmem:[#allocation4] sm:$0xff] %vm38, 0.0
      %44 = vst.msk [vmem:[#allocation4 + $0x8] sm:$0xff] %vm38, 0.0
    $region21: #{tpu_custom_call.1} parent=1 // pred_fallthru
      _
    %v45 = vld [vmem:[%s0] sm:$0xff]
    %v46 = vld [vmem:[%s0 + $0x8] sm:$0xff]
    %v47 = vpack.c.bf16 %v46, %v45
    %s48 = smul.u32 0, 4
    %s49 = smul.addr %s48, 4
    %s50 = scalar_lea.vmem [#allocation5], %s49
    %v51 = vld [vmem:[%s50] sm:$0xf]
    %v52 = vld [vmem:[%s50 + $0x4] sm:$0xf]
    %v53 = vld [vmem:[%s50 + $0x8] sm:$0xf]
    %v54 = vld [vmem:[%s50 + $0xc] sm:$0xf]
    %v59 = vunpack.c.l.b16 %v51
    %v60 = vunpack.c.l.b16 %v52
    %v61 = vunpack.c.l.b16 %v53
    %v62 = vunpack.c.l.b16 %v54
    %v63 = vpack.c.b16 %v60, %v59
    %v64 = vpack.c.b16 %v62, %v61
    %vm67 = vcmask 261120
    %v69 = vsel %vm67, %v47, 0
    %71 = vmatpush.bf16.msra.mxu0 0
    %72 = vmatpush.bf16.msra.mxu0 0
    %73 = vmatpush.bf16.msra.mxu0 0
    %74 = vmatpush.bf16.msra.mxu0 0
    %75 = vmatpush.bf16.msra.mxu0 0
    %76 = vmatpush.bf16.msra.mxu0 0
    %77 = vmatpush.bf16.msra.mxu0 %v64
    %78 = vmatpush.bf16.msra.mxu0 %v63
    %79 = vmatmul.bf16.gmra.mxu0 %v69
    %v80 = vpop.f32.mrf.mxu0
    %v81 = vadd.f32 0.0, %v80
    %v82 = vpop.f32.mrf.mxu0
    %v83 = vadd.f32 0.0, %v82
    %84 = vdwg.mxu0
    %v85 = vmul.f32 %v81, 2.0
    %v86 = vmul.f32 %v83, 2.0
    %87 = vst [vmem:[#allocation8] sm:$0xff] %v85
    %88 = vst [vmem:[#allocation8 + $0x8] sm:$0xff] %v86
    %v89 = vlaneseq
    %v90 = vand.u32 %v89, 127
    %s91 = smul.u32 0, 128
    %s92 = ssub.s32 16, %s91
    %v93 = vstv %s92
    %vm94 = vcmp.lt.s32.totalorder %v90, %v93
    %v95 = vsel %vm94, %v85, -inf
    %v96 = vsel %vm94, %v86, -inf
    %v97 = vld [vmem:[#allocation2] sm:$0xff]
    %v98 = vld [vmem:[#allocation2 + $0x8] sm:$0xff]
    %99 = vmax.xlane.f32.xlu0 %v95
    %v100 = vpop.xlane.xlu0 %99
    %101 = vmax.xlane.f32.xlu0 %v96
    %v102 = vpop.xlane.xlu0 %101
    %v103 = vmax.f32 %v97, %v100
    %v104 = vmax.f32 %v98, %v102
    %v105 = vld [vmem:[#allocation3] sm:$0xff]
    %v106 = vld [vmem:[#allocation3 + $0x8] sm:$0xff]
    %v107 = vsub.f32 %v97, %v103
    %v108 = vsub.f32 %v98, %v104
    %v109 = vmul.f32 %v107, 1.442695
    %v110 = vpow.pop %v109
    %v111 = vmul.f32 %v108, 1.442695
    %v112 = vpow.pop %v111
    %v113 = vmul.f32 %v105, %v110
    %v114 = vmul.f32 %v106, %v112
    %116 = vset.pattern.permute.xlu0 0
    %117 = vperm.xlu0 %116, %v103
    %v118 = vpop.permute.xlu0 %117
    %121 = vset.pattern.permute.xlu0 0
    %122 = vperm.xlu0 %121, %v104
    %v123 = vpop.permute.xlu0 %122
    %v125 = vsub.f32 %v95, %v118
    %v126 = vsub.f32 %v96, %v123
    %v127 = vmul.f32 %v125, 1.442695
    %v128 = vpow.pop %v127
    %v129 = vmul.f32 %v126, 1.442695
    %v130 = vpow.pop %v129
    %131 = vadd.xlane.f32.xlu0 %v128
    %v132 = vpop.xlane.xlu0 %131
    %133 = vadd.xlane.f32.xlu0 %v130
    %v134 = vpop.xlane.xlu0 %133
    %v135 = vadd.f32 %v113, %v132
    %v136 = vadd.f32 %v114, %v134
    %vm137 = vcmask 7168
    %138 = vst.msk [vmem:[#allocation3] sm:$0xff] %vm137, %v135
    %139 = vst.msk [vmem:[#allocation3 + $0x8] sm:$0xff] %vm137, %v136
    %140 = vst.msk [vmem:[#allocation2] sm:$0xff] %vm137, %v103
    %141 = vst.msk [vmem:[#allocation2 + $0x8] sm:$0xff] %vm137, %v104
    %v142 = vld [vmem:[#allocation4] sm:$0xff]
    %v143 = vld [vmem:[#allocation4 + $0x8] sm:$0xff]
    %v144 = vld [vmem:[%s2] sm:$0xff]
    %v145 = vld [vmem:[%s2 + $0x8] sm:$0xff]
    %v146 = vstv %s91
    %v147 = vsub.s32 %v144, %v146
    %v148 = vsub.s32 %v145, %v146
    %149 = vset.pattern.permute.xlu0 0
    %150 = vperm.xlu0 %149, %v147
    %v151 = vpop.permute.xlu0 %150
    %152 = vset.pattern.permute.xlu0 0
    %153 = vperm.xlu0 %152, %v148
    %v154 = vpop.permute.xlu0 %153
    %vm155 = vcmp.eq.s32.totalorder %v90, %v151
    %vm156 = vcmp.eq.s32.totalorder %v90, %v154
    %v157 = vsel %vm155, %v85, 0.0
    %v158 = vsel %vm156, %v86, 0.0
    %159 = vadd.xlane.f32.xlu0 %v157
    %v160 = vpop.xlane.xlu0 %159
    %161 = vadd.xlane.f32.xlu0 %v158
    %v162 = vpop.xlane.xlu0 %161
    %v163 = vadd.f32 %v142, %v160
    %v164 = vadd.f32 %v143, %v162
    %165 = vst.msk [vmem:[#allocation4] sm:$0xff] %vm137, %v163
    %166 = vst.msk [vmem:[#allocation4 + $0x8] sm:$0xff] %vm137, %v164
    // Predicated region
    $region22: #{tpu_custom_call.1} parent=1 // pred_check
      %p167 = pneg %p34
    $region23: #{tpu_custom_call.1} parent=1 // pred_check_branch
      %169 = sbr.rel (%p167) target = $region25
    $region24: #{tpu_custom_call.1} parent=1 // pred_region
      %v170 = vld [vmem:[#allocation2] sm:$0xff]
      %v171 = vld [vmem:[#allocation2 + $0x8] sm:$0xff]
      %v172 = vld [vmem:[#allocation3] sm:$0xff]
      %v173 = vld [vmem:[#allocation3 + $0x8] sm:$0xff]
      %v174 = vlog2.pop %v172
      %v175 = vmul.f32 %v174, 0.6931472
      %v176 = vlog2.pop %v173
      %v177 = vmul.f32 %v176, 0.6931472
      %v178 = vadd.f32 %v170, %v175
      %v179 = vadd.f32 %v171, %v177
      %v180 = vld [vmem:[#allocation4] sm:$0xff]
      %v181 = vld [vmem:[#allocation4 + $0x8] sm:$0xff]
      %v182 = vsub.f32 %v178, %v180
      %v183 = vsub.f32 %v179, %v181
      %s184 = smul.u32 0, 16
      %v185 = vlaneseq
      %v186 = vshrl.u32 %v185, 7
      %v187 = vadd.s32 %v186, 8
      %v188 = vstv %s184
      %v189 = vadd.s32 %v188, %v186
      %v190 = vadd.s32 %v188, %v187
      %vm191 = vcmp.lt.s32.totalorder %v189, 8
      %vm192 = vcmp.lt.s32.totalorder %v190, 8
      %v193 = vsel %vm191, %v182, 0.0
      %v194 = vsel %vm192, %v183, 0.0
      %195 = vst.msk [vmem:[%s4] sm:$0xff] %vm137, %v193
      %196 = vst.msk [vmem:[%s4 + $0x8] sm:$0xff] %vm137, %v194
    $region25: #{tpu_custom_call.1} parent=1 // pred_fallthru
      _
    // Predicated region
    $region26: #{tpu_custom_call.1} parent=1 // pred_check
      _
    $region27: #{tpu_custom_call.1} parent=1 // pred_check_branch
      %198 = sbr.rel (0) target = $region29
    $region28: #{tpu_custom_call.1} parent=1 // pred_region
      %200 = vsyncadd [#allocation7], 0
      %s201 = sshll.u32 [#allocation8], 4
      %s202 = int_to_ptr.vmem [resolvable:$true] %s201
      %s203 = sshll.u32 %s3, 4
      %s204 = int_to_ptr.hbm [resolvable:$true] %s203
      %209 = dma.vmem_to_hbm [thread:$0]  %s202, 256, %s204, [#allocation7], 128, 128, 8
    $region29: #{tpu_custom_call.1} parent=1 // pred_fallthru
      _
    // Predicated region
    $region30: #{tpu_custom_call.1} parent=1 // pred_check
      _
    $region31: #{tpu_custom_call.1} parent=1 // pred_check_branch
      %211 = sbr.rel (0) target = $region33
    $region32: #{tpu_custom_call.1} parent=1 // pred_region
      _
    $region33: #{tpu_custom_call.1} parent=1 // pred_fallthru
      _
    // Predicated region
    $region34: #{tpu_custom_call.1} parent=1 // pred_check
      _
    $region35: #{tpu_custom_call.1} parent=1 // pred_check_branch
      %213 = sbr.rel (0) target = $region37
    $region36: #{tpu_custom_call.1} parent=1 // pred_region
      %215 = dma.done [#allocation7], 256
    $region37: #{tpu_custom_call.1} parent=1 // pred_fallthru
      _
    // Predicated region
    $region38: #{tpu_custom_call.1} parent=1 // pred_check
      _
    $region39: #{tpu_custom_call.1} parent=1 // pred_check_branch
      %217 = sbr.rel (0) target = $region41
    $region40: #{tpu_custom_call.1} parent=1 // pred_region
      _
    $region41: #{tpu_custom_call.1} parent=1 // pred_fallthru
      _
    %218 = vsyncpa [#allocation6], 1
    %219 = vsyncpa [#allocation7], 1

</llo_original>
